<compile_context>
chip_gen: v6e
topology: v6e:2x2x1
jax: 0.10.0
libtpu: 0.0.40
codegen_flags: <defaults>
</compile_context>

<pallas_src>
import jax
import jax.numpy as jnp
from jax.experimental import pallas as pl
from jax.experimental.pallas import tpu as pltpu


def _rnn_kernel(x_ref, wih_ref, whh_ref, brnn_ref, wl_ref, bl_ref,
                out_ref, hs_ref):
    """Full RNN + head in one invocation.

    x_ref    : (B, T, I)   input, batch_first (same layout as PyTorch)
    wih_ref  : (I, H)      W_ih^T
    whh_ref  : (H, H)      W_hh^T
    brnn_ref : (1, H)      b_ih + b_hh
    wl_ref   : (H, O)      W_linear^T
    bl_ref   : (1, O)      b_linear
    out_ref  : (B*T, O)    tanh(Linear(h_t)), row-major (b, t) order
    hs_ref   : (B, T, H)   VMEM scratch holding every hidden state
    """
    B, T, I = x_ref.shape
    H = whh_ref.shape[0]

    # --- input projection for all timesteps at once (off the critical path) ---
    # xw[b, t] = x[b, t] @ W_ih^T + (b_ih + b_hh); bias broadcast hoisted here.
    x_flat = x_ref[...].reshape(B * T, I)
    xw = (jnp.dot(x_flat, wih_ref[...], preferred_element_type=jnp.float32)
          + brnn_ref[...]).reshape(B, T, H)

    # --- serial recurrence: only one tiny (B,H)x(H,H) matmul per step ---
    whh = whh_ref[...]
    h = jnp.zeros((B, H), jnp.float32)           # h_0 = 0 (hidden=None in PyTorch)
    for t in range(T):                           # static unroll; T is small & static
        # TODO(synk): for large T switch to lax.fori_loop over a VMEM xw scratch.
        h = jnp.tanh(xw[:, t, :]
                     + jnp.dot(h, whh, preferred_element_type=jnp.float32))
        hs_ref[:, t, :] = h

    # --- head: one batched (B*T, H) x (H, O) matmul + tanh, single store ---
    hs_flat = hs_ref[...].reshape(B * T, H)
    out_ref[...] = jnp.tanh(
        jnp.dot(hs_flat, wl_ref[...], preferred_element_type=jnp.float32)
        + bl_ref[...]
    )


def net_forward(x, params):
    """x: (B, T, I) float32.  Returns (B, T*O, 1) float32 (matches .view(B,-1,1))."""
    wih_t, whh_t, b_rnn, wl_t, b_l = params
    B, T, I = x.shape
    H = whh_t.shape[0]
    O = wl_t.shape[1]

    vmem = pl.BlockSpec(memory_space=pltpu.MemorySpace.VMEM)

    out_flat = pl.pallas_call(
        _rnn_kernel,
        out_shape=jax.ShapeDtypeStruct((B * T, O), jnp.float32),
        in_specs=[vmem] * 6,
        out_specs=vmem,
        scratch_shapes=[pltpu.VMEM((B, T, H), jnp.float32)],  # all hidden states
    )(x, wih_t, whh_t, b_rnn, wl_t, b_l)

    # (B*T, O) is already in (b, t, o) row-major order -> free reshape.
    return out_flat.reshape(B, -1, 1)


def init_params(key, input_size, hidden_size, output_size):
    """Deterministic synthetic parameters, PyTorch-style uniform(-k, k)."""
    k_rnn = 1.0 / jnp.sqrt(hidden_size)
    k_lin = 1.0 / jnp.sqrt(hidden_size)
    ks = jax.random.split(key, 6)
    w_ih = jax.random.uniform(ks[0], (hidden_size, input_size), jnp.float32, -k_rnn, k_rnn)
    w_hh = jax.random.uniform(ks[1], (hidden_size, hidden_size), jnp.float32, -k_rnn, k_rnn)
    b_ih = jax.random.uniform(ks[2], (hidden_size,), jnp.float32, -k_rnn, k_rnn)
    b_hh = jax.random.uniform(ks[3], (hidden_size,), jnp.float32, -k_rnn, k_rnn)
    w_l = jax.random.uniform(ks[4], (output_size, hidden_size), jnp.float32, -k_lin, k_lin)
    b_l = jax.random.uniform(ks[5], (output_size,), jnp.float32, -k_lin, k_lin)
    # Pre-transpose / combine for the kernel.
    return (
        w_ih.T,                                 # (I, H)
        w_hh.T,                                 # (H, H)
        (b_ih + b_hh).reshape(1, hidden_size),  # (1, H)
        w_l.T,                                  # (H, O)
        b_l.reshape(1, output_size),            # (1, O)
    )


def _reference(x, params):
    """Pure-JAX reference (lax.scan) mirroring the PyTorch forward."""
    wih_t, whh_t, b_rnn, wl_t, b_l = params
    B = x.shape[0]
    H = whh_t.shape[0]

    def step(h, x_t):
        h_new = jnp.tanh(x_t @ wih_t + h @ whh_t + b_rnn)
        return h_new, h_new

    h0 = jnp.zeros((B, H), jnp.float32)
    _, hs = jax.lax.scan(step, h0, jnp.transpose(x, (1, 0, 2)))  # (T, B, H)
    pred = jnp.tanh(hs @ wl_t + b_l)                             # (T, B, O)
    pred = jnp.transpose(pred, (1, 0, 2))                        # (B, T, O)
    return pred.reshape(B, -1, 1)


if __name__ == "__main__":
    # Small shapes implied by the module: seq-to-seq RNN regression head.
    B, T, I, H, O = 2, 8, 4, 32, 1

    key = jax.random.PRNGKey(0)
    k_x, k_p = jax.random.split(key)
    x = jax.random.normal(k_x, (B, T, I), jnp.float32)
    params = init_params(k_p, I, H, O)

    out = jax.block_until_ready(net_forward(x, params))
    assert out.shape == (B, T * O, 1), out.shape

    ref = jax.block_until_ready(_reference(x, params))
    assert jnp.allclose(out, ref, atol=1e-5, rtol=1e-5), "mismatch vs reference"

    print("KERNEL_OK")
</pallas_src>

<mosaic_0001>
module attributes {stable_mosaic.version = 11 : i64} {
  func.func @_rnn_kernel(%arg0: memref<2x8x4xf32, #tpu.memory_space<vmem>>, %arg1: memref<4x32xf32, #tpu.memory_space<vmem>>, %arg2: memref<32x32xf32, #tpu.memory_space<vmem>>, %arg3: memref<1x32xf32, #tpu.memory_space<vmem>>, %arg4: memref<32x1xf32, #tpu.memory_space<vmem>>, %arg5: memref<1x1xf32, #tpu.memory_space<vmem>>, %arg6: memref<16x1xf32, #tpu.memory_space<vmem>>, %arg7: memref<2x8x32xf32, #tpu.memory_space<vmem>>) attributes {dimension_semantics = [], scalar_prefetch = 0 : i64, scratch_operands = 1 : i64, tpu.core_type = #tpu.core_type<tc>} {
    %c0 = arith.constant 0 : index
    %c0_0 = arith.constant 0 : index
    %c0_1 = arith.constant 0 : index
    %0 = vector.load %arg0[%c0, %c0_0, %c0_1] : memref<2x8x4xf32, #tpu.memory_space<vmem>>, vector<2x8x4xf32>
    %1 = vector.shape_cast %0 : vector<2x8x4xf32> to vector<16x4xf32>
    %c0_2 = arith.constant 0 : index
    %c0_3 = arith.constant 0 : index
    %2 = vector.load %arg1[%c0_2, %c0_3] : memref<4x32xf32, #tpu.memory_space<vmem>>, vector<4x32xf32>
    %cst = arith.constant dense<0.000000e+00> : vector<16x32xf32>
    %3 = tpu.matmul %1, %2, %cst {dimension_numbers = #tpu.dot_dimension_numbers<[1], [0], [0], [1], [0, 0, 1, 1], [], []>} : vector<16x4xf32>, vector<4x32xf32>, vector<16x32xf32> -> vector<16x32xf32>
    %c0_4 = arith.constant 0 : index
    %c0_5 = arith.constant 0 : index
    %4 = vector.load %arg3[%c0_4, %c0_5] : memref<1x32xf32, #tpu.memory_space<vmem>>, vector<1x32xf32>
    %5 = vector.broadcast %4 : vector<1x32xf32> to vector<16x32xf32>
    %6 = arith.addf %3, %5 : vector<16x32xf32>
    %7 = vector.shape_cast %6 : vector<16x32xf32> to vector<2x8x32xf32>
    %c0_6 = arith.constant 0 : index
    %c0_7 = arith.constant 0 : index
    %8 = vector.load %arg2[%c0_6, %c0_7] : memref<32x32xf32, #tpu.memory_space<vmem>>, vector<32x32xf32>
    %cst_8 = arith.constant 0.000000e+00 : f32
    %9 = vector.broadcast %cst_8 : f32 to vector<2x32xf32>
    %10 = vector.extract_strided_slice %7 {offsets = [0, 0, 0], sizes = [2, 1, 32], strides = [1, 1, 1]} : vector<2x8x32xf32> to vector<2x1x32xf32>
    %11 = vector.shape_cast %10 : vector<2x1x32xf32> to vector<2x32xf32>
    %cst_9 = arith.constant dense<0.000000e+00> : vector<2x32xf32>
    %12 = tpu.matmul %9, %8, %cst_9 {dimension_numbers = #tpu.dot_dimension_numbers<[1], [0], [0], [1], [0, 0, 1, 1], [], []>} : vector<2x32xf32>, vector<32x32xf32>, vector<2x32xf32> -> vector<2x32xf32>
    %13 = arith.addf %11, %12 : vector<2x32xf32>
    %14 = math.tanh %13 : vector<2x32xf32>
    %c0_10 = arith.constant 0 : index
    %c0_11 = arith.constant 0 : index
    %c0_12 = arith.constant 0 : index
    %15 = vector.load %arg7[%c0_10, %c0_11, %c0_12] : memref<2x8x32xf32, #tpu.memory_space<vmem>>, vector<2x1x32xf32>
    %16 = vector.shape_cast %15 : vector<2x1x32xf32> to vector<2x32xf32>
    %17 = vector.shape_cast %14 : vector<2x32xf32> to vector<2x1x32xf32>
    tpu.vector_store %arg7[%c0_10, %c0_11, %c0_12], %17 {strides = array<i32>} : memref<2x8x32xf32, #tpu.memory_space<vmem>>, vector<2x1x32xf32>,
    %18 = vector.extract_strided_slice %7 {offsets = [0, 1, 0], sizes = [2, 1, 32], strides = [1, 1, 1]} : vector<2x8x32xf32> to vector<2x1x32xf32>
    %19 = vector.shape_cast %18 : vector<2x1x32xf32> to vector<2x32xf32>
    %cst_13 = arith.constant dense<0.000000e+00> : vector<2x32xf32>
    %20 = tpu.matmul %14, %8, %cst_13 {dimension_numbers = #tpu.dot_dimension_numbers<[1], [0], [0], [1], [0, 0, 1, 1], [], []>} : vector<2x32xf32>, vector<32x32xf32>, vector<2x32xf32> -> vector<2x32xf32>
    %21 = arith.addf %19, %20 : vector<2x32xf32>
    %22 = math.tanh %21 : vector<2x32xf32>
    %c0_14 = arith.constant 0 : index
    %c1 = arith.constant 1 : index
    %c0_15 = arith.constant 0 : index
    %23 = vector.load %arg7[%c0_14, %c1, %c0_15] : memref<2x8x32xf32, #tpu.memory_space<vmem>>, vector<2x1x32xf32>
    %24 = vector.shape_cast %23 : vector<2x1x32xf32> to vector<2x32xf32>
    %25 = vector.shape_cast %22 : vector<2x32xf32> to vector<2x1x32xf32>
    tpu.vector_store %arg7[%c0_14, %c1, %c0_15], %25 {strides = array<i32>} : memref<2x8x32xf32, #tpu.memory_space<vmem>>, vector<2x1x32xf32>,
    %26 = vector.extract_strided_slice %7 {offsets = [0, 2, 0], sizes = [2, 1, 32], strides = [1, 1, 1]} : vector<2x8x32xf32> to vector<2x1x32xf32>
    %27 = vector.shape_cast %26 : vector<2x1x32xf32> to vector<2x32xf32>
    %cst_16 = arith.constant dense<0.000000e+00> : vector<2x32xf32>
    %28 = tpu.matmul %22, %8, %cst_16 {dimension_numbers = #tpu.dot_dimension_numbers<[1], [0], [0], [1], [0, 0, 1, 1], [], []>} : vector<2x32xf32>, vector<32x32xf32>, vector<2x32xf32> -> vector<2x32xf32>
    %29 = arith.addf %27, %28 : vector<2x32xf32>
    %30 = math.tanh %29 : vector<2x32xf32>
    %c0_17 = arith.constant 0 : index
    %c2 = arith.constant 2 : index
    %c0_18 = arith.constant 0 : index
    %31 = vector.load %arg7[%c0_17, %c2, %c0_18] : memref<2x8x32xf32, #tpu.memory_space<vmem>>, vector<2x1x32xf32>
    %32 = vector.shape_cast %31 : vector<2x1x32xf32> to vector<2x32xf32>
    %33 = vector.shape_cast %30 : vector<2x32xf32> to vector<2x1x32xf32>
    tpu.vector_store %arg7[%c0_17, %c2, %c0_18], %33 {strides = array<i32>} : memref<2x8x32xf32, #tpu.memory_space<vmem>>, vector<2x1x32xf32>,
    %34 = vector.extract_strided_slice %7 {offsets = [0, 3, 0], sizes = [2, 1, 32], strides = [1, 1, 1]} : vector<2x8x32xf32> to vector<2x1x32xf32>
    %35 = vector.shape_cast %34 : vector<2x1x32xf32> to vector<2x32xf32>
    %cst_19 = arith.constant dense<0.000000e+00> : vector<2x32xf32>
    %36 = tpu.matmul %30, %8, %cst_19 {dimension_numbers = #tpu.dot_dimension_numbers<[1], [0], [0], [1], [0, 0, 1, 1], [], []>} : vector<2x32xf32>, vector<32x32xf32>, vector<2x32xf32> -> vector<2x32xf32>
    %37 = arith.addf %35, %36 : vector<2x32xf32>
    %38 = math.tanh %37 : vector<2x32xf32>
    %c0_20 = arith.constant 0 : index
    %c3 = arith.constant 3 : index
    %c0_21 = arith.constant 0 : index
    %39 = vector.load %arg7[%c0_20, %c3, %c0_21] : memref<2x8x32xf32, #tpu.memory_space<vmem>>, vector<2x1x32xf32>
    %40 = vector.shape_cast %39 : vector<2x1x32xf32> to vector<2x32xf32>
    %41 = vector.shape_cast %38 : vector<2x32xf32> to vector<2x1x32xf32>
    tpu.vector_store %arg7[%c0_20, %c3, %c0_21], %41 {strides = array<i32>} : memref<2x8x32xf32, #tpu.memory_space<vmem>>, vector<2x1x32xf32>,
    %42 = vector.extract_strided_slice %7 {offsets = [0, 4, 0], sizes = [2, 1, 32], strides = [1, 1, 1]} : vector<2x8x32xf32> to vector<2x1x32xf32>
    %43 = vector.shape_cast %42 : vector<2x1x32xf32> to vector<2x32xf32>
    %cst_22 = arith.constant dense<0.000000e+00> : vector<2x32xf32>
    %44 = tpu.matmul %38, %8, %cst_22 {dimension_numbers = #tpu.dot_dimension_numbers<[1], [0], [0], [1], [0, 0, 1, 1], [], []>} : vector<2x32xf32>, vector<32x32xf32>, vector<2x32xf32> -> vector<2x32xf32>
    %45 = arith.addf %43, %44 : vector<2x32xf32>
    %46 = math.tanh %45 : vector<2x32xf32>
    %c0_23 = arith.constant 0 : index
    %c4 = arith.constant 4 : index
    %c0_24 = arith.constant 0 : index
    %47 = vector.load %arg7[%c0_23, %c4, %c0_24] : memref<2x8x32xf32, #tpu.memory_space<vmem>>, vector<2x1x32xf32>
    %48 = vector.shape_cast %47 : vector<2x1x32xf32> to vector<2x32xf32>
    %49 = vector.shape_cast %46 : vector<2x32xf32> to vector<2x1x32xf32>
    tpu.vector_store %arg7[%c0_23, %c4, %c0_24], %49 {strides = array<i32>} : memref<2x8x32xf32, #tpu.memory_space<vmem>>, vector<2x1x32xf32>,
    %50 = vector.extract_strided_slice %7 {offsets = [0, 5, 0], sizes = [2, 1, 32], strides = [1, 1, 1]} : vector<2x8x32xf32> to vector<2x1x32xf32>
    %51 = vector.shape_cast %50 : vector<2x1x32xf32> to vector<2x32xf32>
    %cst_25 = arith.constant dense<0.000000e+00> : vector<2x32xf32>
    %52 = tpu.matmul %46, %8, %cst_25 {dimension_numbers = #tpu.dot_dimension_numbers<[1], [0], [0], [1], [0, 0, 1, 1], [], []>} : vector<2x32xf32>, vector<32x32xf32>, vector<2x32xf32> -> vector<2x32xf32>
    %53 = arith.addf %51, %52 : vector<2x32xf32>
    %54 = math.tanh %53 : vector<2x32xf32>
    %c0_26 = arith.constant 0 : index
    %c5 = arith.constant 5 : index
    %c0_27 = arith.constant 0 : index
    %55 = vector.load %arg7[%c0_26, %c5, %c0_27] : memref<2x8x32xf32, #tpu.memory_space<vmem>>, vector<2x1x32xf32>
    %56 = vector.shape_cast %55 : vector<2x1x32xf32> to vector<2x32xf32>
    %57 = vector.shape_cast %54 : vector<2x32xf32> to vector<2x1x32xf32>
    tpu.vector_store %arg7[%c0_26, %c5, %c0_27], %57 {strides = array<i32>} : memref<2x8x32xf32, #tpu.memory_space<vmem>>, vector<2x1x32xf32>,
    %58 = vector.extract_strided_slice %7 {offsets = [0, 6, 0], sizes = [2, 1, 32], strides = [1, 1, 1]} : vector<2x8x32xf32> to vector<2x1x32xf32>
    %59 = vector.shape_cast %58 : vector<2x1x32xf32> to vector<2x32xf32>
    %cst_28 = arith.constant dense<0.000000e+00> : vector<2x32xf32>
    %60 = tpu.matmul %54, %8, %cst_28 {dimension_numbers = #tpu.dot_dimension_numbers<[1], [0], [0], [1], [0, 0, 1, 1], [], []>} : vector<2x32xf32>, vector<32x32xf32>, vector<2x32xf32> -> vector<2x32xf32>
    %61 = arith.addf %59, %60 : vector<2x32xf32>
    %62 = math.tanh %61 : vector<2x32xf32>
    %c0_29 = arith.constant 0 : index
    %c6 = arith.constant 6 : index
    %c0_30 = arith.constant 0 : index
    %63 = vector.load %arg7[%c0_29, %c6, %c0_30] : memref<2x8x32xf32, #tpu.memory_space<vmem>>, vector<2x1x32xf32>
    %64 = vector.shape_cast %63 : vector<2x1x32xf32> to vector<2x32xf32>
    %65 = vector.shape_cast %62 : vector<2x32xf32> to vector<2x1x32xf32>
    tpu.vector_store %arg7[%c0_29, %c6, %c0_30], %65 {strides = array<i32>} : memref<2x8x32xf32, #tpu.memory_space<vmem>>, vector<2x1x32xf32>,
    %66 = vector.extract_strided_slice %7 {offsets = [0, 7, 0], sizes = [2, 1, 32], strides = [1, 1, 1]} : vector<2x8x32xf32> to vector<2x1x32xf32>
    %67 = vector.shape_cast %66 : vector<2x1x32xf32> to vector<2x32xf32>
    %cst_31 = arith.constant dense<0.000000e+00> : vector<2x32xf32>
    %68 = tpu.matmul %62, %8, %cst_31 {dimension_numbers = #tpu.dot_dimension_numbers<[1], [0], [0], [1], [0, 0, 1, 1], [], []>} : vector<2x32xf32>, vector<32x32xf32>, vector<2x32xf32> -> vector<2x32xf32>
    %69 = arith.addf %67, %68 : vector<2x32xf32>
    %70 = math.tanh %69 : vector<2x32xf32>
    %c0_32 = arith.constant 0 : index
    %c7 = arith.constant 7 : index
    %c0_33 = arith.constant 0 : index
    %71 = vector.load %arg7[%c0_32, %c7, %c0_33] : memref<2x8x32xf32, #tpu.memory_space<vmem>>, vector<2x1x32xf32>
    %72 = vector.shape_cast %71 : vector<2x1x32xf32> to vector<2x32xf32>
    %73 = vector.shape_cast %70 : vector<2x32xf32> to vector<2x1x32xf32>
    tpu.vector_store %arg7[%c0_32, %c7, %c0_33], %73 {strides = array<i32>} : memref<2x8x32xf32, #tpu.memory_space<vmem>>, vector<2x1x32xf32>,
    %c0_34 = arith.constant 0 : index
    %c0_35 = arith.constant 0 : index
    %c0_36 = arith.constant 0 : index
    %74 = vector.load %arg7[%c0_34, %c0_35, %c0_36] : memref<2x8x32xf32, #tpu.memory_space<vmem>>, vector<2x8x32xf32>
    %75 = vector.shape_cast %74 : vector<2x8x32xf32> to vector<16x32xf32>
    %c0_37 = arith.constant 0 : index
    %c0_38 = arith.constant 0 : index
    %76 = vector.load %arg4[%c0_37, %c0_38] : memref<32x1xf32, #tpu.memory_space<vmem>>, vector<32x1xf32>
    %cst_39 = arith.constant dense<0.000000e+00> : vector<16x1xf32>
    %77 = tpu.matmul %75, %76, %cst_39 {dimension_numbers = #tpu.dot_dimension_numbers<[1], [0], [0], [1], [0, 0, 1, 1], [], []>} : vector<16x32xf32>, vector<32x1xf32>, vector<16x1xf32> -> vector<16x1xf32>
    %c0_40 = arith.constant 0 : index
    %c0_41 = arith.constant 0 : index
    %78 = vector.load %arg5[%c0_40, %c0_41] : memref<1x1xf32, #tpu.memory_space<vmem>>, vector<1x1xf32>
    %79 = vector.broadcast %78 : vector<1x1xf32> to vector<16x1xf32>
    %80 = arith.addf %77, %79 : vector<16x1xf32>
    %81 = math.tanh %80 : vector<16x1xf32>
    %c0_42 = arith.constant 0 : index
    %c0_43 = arith.constant 0 : index
    %82 = vector.load %arg6[%c0_42, %c0_43] : memref<16x1xf32, #tpu.memory_space<vmem>>, vector<16x1xf32>
    tpu.vector_store %arg6[%c0_42, %c0_43], %81 {strides = array<i32>} : memref<16x1xf32, #tpu.memory_space<vmem>>, vector<16x1xf32>,
    return
  }
}

</mosaic_0001>

<llo_original>
// kernel: tpu_custom_call.1
$region0: #{tpu_custom_call.1}
  #allocation0 [shape = 'u32[]', space=smem, size = 0x4, offset = 0x4, fixed_abs, tag = 'smem constant byte address 0x4 - core index']
  #allocation1 [shape = 'u32[144,128]{1,0:T(1,128)}', space=vmem, size = 0x12000, scoped, tag = 'internal scratch']
  #allocation2 [shape = 'f32[2,8,32]{2,1,0:T(8,128)}', space=vmem, size = 0x2000, scoped, tag = 'scratch operand']
  #allocation3 [shape = 'f32[1,1]{1,0:T(1,128)S(1)}', space=vmem, size = 0x200, scoped, tag = 'scoped memory for tpu_custom_call.1']
  %s0 = inlined_call_operand.vmem [shape: f32[2,8,4], index: 0, kind: input, shape index: {}]
  %s1 = inlined_call_operand.vmem [shape: f32[4,32], index: 1, kind: input, shape index: {}]
  %s2 = inlined_call_operand.vmem [shape: f32[32,32], index: 2, kind: input, shape index: {}]
  %s3 = inlined_call_operand.vmem [shape: f32[1,32], index: 3, kind: input, shape index: {}]
  %s4 = inlined_call_operand.vmem [shape: f32[32,1], index: 4, kind: input, shape index: {}]
  %s5 = inlined_call_operand.<no memory space> [shape: f32[1,1], index: 5, kind: input, shape index: {}]
  %s6 = inlined_call_operand.vmem [shape: f32[16,1], index: 6, kind: output, shape index: {}]
  %s7 = sld [smem:[#allocation0]]
  $region34: #{tpu_custom_call.1} parent=0
    _
  %s9 = ssub.s32 1, %s7
  %s10 = scalar_select 0, %s9, %s7
  %v11 = vstv %s5
  %12 = vst [vmem:[#allocation3] sm:$0x1] %v11
  // Predicated region
  $region2: #{tpu_custom_call.1} parent=0 // pred_check
    _
  $region3: #{tpu_custom_call.1} parent=0 // pred_check_branch
    %14 = sbr.rel (0) target = $region5
  $region4: #{tpu_custom_call.1} parent=0 // pred_region
    _
  $region5: #{tpu_custom_call.1} parent=0 // pred_fallthru
    _
  // Predicated region
  $region6: #{tpu_custom_call.1} parent=0 // pred_check
    _
  $region7: #{tpu_custom_call.1} parent=0 // pred_check_branch
    %16 = sbr.rel (0) target = $region9
  $region8: #{tpu_custom_call.1} parent=0 // pred_region
    _
  $region9: #{tpu_custom_call.1} parent=0 // pred_fallthru
    _
  // Predicated region
  $region10: #{tpu_custom_call.1} parent=0 // pred_check
    _
  $region11: #{tpu_custom_call.1} parent=0 // pred_check_branch
    %18 = sbr.rel (0) target = $region13
  $region12: #{tpu_custom_call.1} parent=0 // pred_region
    _
  $region13: #{tpu_custom_call.1} parent=0 // pred_fallthru
    _
  // Predicated region
  $region14: #{tpu_custom_call.1} parent=0 // pred_check
    _
  $region15: #{tpu_custom_call.1} parent=0 // pred_check_branch
    %20 = sbr.rel (0) target = $region17
  $region16: #{tpu_custom_call.1} parent=0 // pred_region
    _
  $region17: #{tpu_custom_call.1} parent=0 // pred_fallthru
    _
  // Predicated region
  $region18: #{tpu_custom_call.1} parent=0 // pred_check
    _
  $region19: #{tpu_custom_call.1} parent=0 // pred_check_branch
    %22 = sbr.rel (0) target = $region21
  $region20: #{tpu_custom_call.1} parent=0 // pred_region
    _
  $region21: #{tpu_custom_call.1} parent=0 // pred_fallthru
    _
  // Predicated region
  $region22: #{tpu_custom_call.1} parent=0 // pred_check
    _
  $region23: #{tpu_custom_call.1} parent=0 // pred_check_branch
    %24 = sbr.rel (0) target = $region25
  $region24: #{tpu_custom_call.1} parent=0 // pred_region
    _
  $region25: #{tpu_custom_call.1} parent=0 // pred_fallthru
    _
  %v25 = vld [vmem:[%s0] sm:$0xff]
  %v26 = vld [vmem:[%s0 + $0x8] sm:$0xff]
  %v27 = vld [vmem:[%s1] sm:$0xf]
  %v28 = vld [vmem:[%s3] sm:$0x1]
  %v30 = vlaneseq
  %v31 = vshrl.u32 %v30, 7
  %v32 = vsub.s32 0, %v31
  %v33 = vrot.slane %v28, %v32
  %vm35 = vcmask 31744
  %v37 = vsel %vm35, %v25, 0
  %v40 = vsel %vm35, %v26, 0
  %vm42 = vcmask 1043456
  %v44 = vsel %vm42, %v27, 0
  %46 = vmatprep.subr.mxu0 0.0
  %47 = vmatpush1.msra.mxu0 0.0
  %48 = vmatprep.subr.mxu0 0.0
  %49 = vmatpush1.msra.mxu0 0.0
  %50 = vmatprep.subr.mxu0 0.0
  %51 = vmatpush1.msra.mxu0 0.0
  %52 = vmatprep.subr.mxu0 0.0
  %53 = vmatpush1.msra.mxu0 0.0
  %54 = vmatprep.subr.mxu0 0.0
  %55 = vmatpush1.msra.mxu0 0.0
  %56 = vmatprep.subr.mxu0 0.0
  %57 = vmatpush1.msra.mxu0 0.0
  %58 = vmatprep.subr.mxu0 0.0
  %59 = vmatpush1.msra.mxu0 0.0
  %60 = vmatprep.subr.mxu0 0.0
  %61 = vmatpush1.msra.mxu0 0.0
  %62 = vmatprep.subr.mxu0 0.0
  %63 = vmatpush1.msra.mxu0 0.0
  %64 = vmatprep.subr.mxu0 0.0
  %65 = vmatpush1.msra.mxu0 0.0
  %66 = vmatprep.subr.mxu0 0.0
  %67 = vmatpush1.msra.mxu0 0.0
  %68 = vmatprep.subr.mxu0 0.0
  %69 = vmatpush1.msra.mxu0 0.0
  %70 = vmatprep.subr.mxu0 0.0
  %71 = vmatpush1.msra.mxu0 0.0
  %72 = vmatprep.subr.mxu0 0.0
  %73 = vmatpush1.msra.mxu0 0.0
  %74 = vmatprep.subr.mxu0 0.0
  %75 = vmatpush1.msra.mxu0 0.0
  %76 = vmatprep.subr.mxu0 0.0
  %77 = vmatpush1.msra.mxu0 %v44
  %78 = vmatprep.subr.mxu0 0.0
  %79 = vmatpush2.msra.mxu0 0.0
  %80 = vmatprep.subr.mxu0 0.0
  %81 = vmatpush2.msra.mxu0 0.0
  %82 = vmatprep.subr.mxu0 0.0
  %83 = vmatpush2.msra.mxu0 0.0
  %84 = vmatprep.subr.mxu0 0.0
  %85 = vmatpush2.msra.mxu0 0.0
  %86 = vmatprep.subr.mxu0 0.0
  %87 = vmatpush2.msra.mxu0 0.0
  %88 = vmatprep.subr.mxu0 0.0
  %89 = vmatpush2.msra.mxu0 0.0
  %90 = vmatprep.subr.mxu0 0.0
  %91 = vmatpush2.msra.mxu0 0.0
  %92 = vmatprep.subr.mxu0 0.0
  %93 = vmatpush2.msra.mxu0 0.0
  %94 = vmatprep.subr.mxu0 0.0
  %95 = vmatpush2.msra.mxu0 0.0
  %96 = vmatprep.subr.mxu0 0.0
  %97 = vmatpush2.msra.mxu0 0.0
  %98 = vmatprep.subr.mxu0 0.0
  %99 = vmatpush2.msra.mxu0 0.0
  %100 = vmatprep.subr.mxu0 0.0
  %101 = vmatpush2.msra.mxu0 0.0
  %102 = vmatprep.subr.mxu0 0.0
  %103 = vmatpush2.msra.mxu0 0.0
  %104 = vmatprep.subr.mxu0 0.0
  %105 = vmatpush2.msra.mxu0 0.0
  %106 = vmatprep.subr.mxu0 0.0
  %107 = vmatpush2.msra.mxu0 0.0
  %108 = vmatprep.subr.mxu0 0.0
  %109 = vmatpush2.msra.mxu0 0.0
  %110 = vmatprep.mubr.f32.mxu0 0.0
  %111 = vmatmul.mubr.f32.gmra.mxu0 %v37
  %v112 = vpop.f32.mrf.mxu0
  %v113 = vadd.f32 %v33, %v112
  %v114 = vpop.f32.mrf.mxu0
  %115 = vmatprep.mubr.f32.mxu0 0.0
  %116 = vmatmul.mubr.f32.gmra.mxu0 %v40
  %v117 = vpop.f32.mrf.mxu0
  %v118 = vadd.f32 %v33, %v117
  %v119 = vpop.f32.mrf.mxu0
  %120 = vdwg.mxu0
  %v121 = vld [vmem:[%s2] sm:$0xff]
  %v122 = vld [vmem:[%s2 + $0x8] sm:$0xff]
  %v123 = vld [vmem:[%s2 + $0x10] sm:$0xff]
  %v124 = vld [vmem:[%s2 + $0x18] sm:$0xff]
  %vm125 = vcmask 261120
  %v127 = vsel %vm125, 0.0, 0
  %129 = vmatprep.subr.mxu0 0.0
  %130 = vmatpush1.msra.mxu0 0.0
  %131 = vmatprep.subr.mxu0 0.0
  %132 = vmatpush1.msra.mxu0 0.0
  %133 = vmatprep.subr.mxu0 0.0
  %134 = vmatpush1.msra.mxu0 0.0
  %135 = vmatprep.subr.mxu0 0.0
  %136 = vmatpush1.msra.mxu0 0.0
  %137 = vmatprep.subr.mxu0 0.0
  %138 = vmatpush1.msra.mxu0 0.0
  %139 = vmatprep.subr.mxu0 0.0
  %140 = vmatpush1.msra.mxu0 0.0
  %141 = vmatprep.subr.mxu0 0.0
  %142 = vmatpush1.msra.mxu0 0.0
  %143 = vmatprep.subr.mxu0 0.0
  %144 = vmatpush1.msra.mxu0 0.0
  %145 = vmatprep.subr.mxu0 0.0
  %146 = vmatpush1.msra.mxu0 0.0
  %147 = vmatprep.subr.mxu0 0.0
  %148 = vmatpush1.msra.mxu0 0.0
  %149 = vmatprep.subr.mxu0 0.0
  %150 = vmatpush1.msra.mxu0 0.0
  %151 = vmatprep.subr.mxu0 0.0
  %152 = vmatpush1.msra.mxu0 0.0
  %153 = vmatprep.subr.mxu0 0.0
  %154 = vmatpush1.msra.mxu0 %v124
  %155 = vmatprep.subr.mxu0 0.0
  %156 = vmatpush1.msra.mxu0 %v123
  %157 = vmatprep.subr.mxu0 0.0
  %158 = vmatpush1.msra.mxu0 %v122
  %159 = vmatprep.subr.mxu0 0.0
  %160 = vmatpush1.msra.mxu0 %v121
  %161 = vmatprep.subr.mxu0 0.0
  %162 = vmatpush2.msra.mxu0 0.0
  %163 = vmatprep.subr.mxu0 0.0
  %164 = vmatpush2.msra.mxu0 0.0
  %165 = vmatprep.subr.mxu0 0.0
  %166 = vmatpush2.msra.mxu0 0.0
  %167 = vmatprep.subr.mxu0 0.0
  %168 = vmatpush2.msra.mxu0 0.0
  %169 = vmatprep.subr.mxu0 0.0
  %170 = vmatpush2.msra.mxu0 0.0
  %171 = vmatprep.subr.mxu0 0.0
  %172 = vmatpush2.msra.mxu0 0.0
  %173 = vmatprep.subr.mxu0 0.0
  %174 = vmatpush2.msra.mxu0 0.0
  %175 = vmatprep.subr.mxu0 0.0
  %176 = vmatpush2.msra.mxu0 0.0
  %177 = vmatprep.subr.mxu0 0.0
  %178 = vmatpush2.msra.mxu0 0.0
  %179 = vmatprep.subr.mxu0 0.0
  %180 = vmatpush2.msra.mxu0 0.0
  %181 = vmatprep.subr.mxu0 0.0
  %182 = vmatpush2.msra.mxu0 0.0
  %183 = vmatprep.subr.mxu0 0.0
  %184 = vmatpush2.msra.mxu0 0.0
  %185 = vmatprep.subr.mxu0 0.0
  %186 = vmatpush2.msra.mxu0 0.0
  %187 = vmatprep.subr.mxu0 0.0
  %188 = vmatpush2.msra.mxu0 0.0
  %189 = vmatprep.subr.mxu0 0.0
  %190 = vmatpush2.msra.mxu0 0.0
  %191 = vmatprep.subr.mxu0 0.0
  %192 = vmatpush2.msra.mxu0 0.0
  %193 = vmatprep.mubr.f32.mxu0 0.0
  %194 = vmatmul.mubr.f32.gmra.mxu0 %v127
  %v195 = vpop.f32.mrf.mxu0
  %v196 = vadd.f32 0.0, %v195
  %v197 = vpop.f32.mrf.mxu0
  %198 = vdwg.mxu0
  %v200 = vrot.slane %v196, 1
  %v203 = vadd.f32 %v113, %v196
  %v204 = vadd.f32 %v118, %v200
  %v205 = vtanh.pop %v203
  %v206 = vtanh.pop %v204
  %vm207 = vcmask 253952
  %208 = vst.msk [vmem:[#allocation2] sm:$0x1] %vm207, %v205
  %209 = vst.msk [vmem:[#allocation2 + $0x8] sm:$0x1] %vm207, %v206
  %v212 = vrot.slane %v206, 7
  %vm213 = vcmask 1041409
  %v214 = vsel %vm213, %v212, %v205
  %v215 = vsel %vm125, %v214, 0
  %217 = vmatprep.subr.mxu0 0.0
  %218 = vmatpush1.msra.mxu0 0.0
  %219 = vmatprep.subr.mxu0 0.0
  %220 = vmatpush1.msra.mxu0 0.0
  %221 = vmatprep.subr.mxu0 0.0
  %222 = vmatpush1.msra.mxu0 0.0
  %223 = vmatprep.subr.mxu0 0.0
  %224 = vmatpush1.msra.mxu0 0.0
  %225 = vmatprep.subr.mxu0 0.0
  %226 = vmatpush1.msra.mxu0 0.0
  %227 = vmatprep.subr.mxu0 0.0
  %228 = vmatpush1.msra.mxu0 0.0
  %229 = vmatprep.subr.mxu0 0.0
  %230 = vmatpush1.msra.mxu0 0.0
  %231 = vmatprep.subr.mxu0 0.0
  %232 = vmatpush1.msra.mxu0 0.0
  %233 = vmatprep.subr.mxu0 0.0
  %234 = vmatpush1.msra.mxu0 0.0
  %235 = vmatprep.subr.mxu0 0.0
  %236 = vmatpush1.msra.mxu0 0.0
  %237 = vmatprep.subr.mxu0 0.0
  %238 = vmatpush1.msra.mxu0 0.0
  %239 = vmatprep.subr.mxu0 0.0
  %240 = vmatpush1.msra.mxu0 0.0
  %241 = vmatprep.subr.mxu0 0.0
  %242 = vmatpush1.msra.mxu0 %v124
  %243 = vmatprep.subr.mxu0 0.0
  %244 = vmatpush1.msra.mxu0 %v123
  %245 = vmatprep.subr.mxu0 0.0
  %246 = vmatpush1.msra.mxu0 %v122
  %247 = vmatprep.subr.mxu0 0.0
  %248 = vmatpush1.msra.mxu0 %v121
  %249 = vmatprep.subr.mxu0 0.0
  %250 = vmatpush2.msra.mxu0 0.0
  %251 = vmatprep.subr.mxu0 0.0
  %252 = vmatpush2.msra.mxu0 0.0
  %253 = vmatprep.subr.mxu0 0.0
  %254 = vmatpush2.msra.mxu0 0.0
  %255 = vmatprep.subr.mxu0 0.0
  %256 = vmatpush2.msra.mxu0 0.0
  %257 = vmatprep.subr.mxu0 0.0
  %258 = vmatpush2.msra.mxu0 0.0
  %259 = vmatprep.subr.mxu0 0.0
  %260 = vmatpush2.msra.mxu0 0.0
  %261 = vmatprep.subr.mxu0 0.0
  %262 = vmatpush2.msra.mxu0 0.0
  %263 = vmatprep.subr.mxu0 0.0
  %264 = vmatpush2.msra.mxu0 0.0
  %265 = vmatprep.subr.mxu0 0.0
  %266 = vmatpush2.msra.mxu0 0.0
  %267 = vmatprep.subr.mxu0 0.0
  %268 = vmatpush2.msra.mxu0 0.0
  %269 = vmatprep.subr.mxu0 0.0
  %270 = vmatpush2.msra.mxu0 0.0
  %271 = vmatprep.subr.mxu0 0.0
  %272 = vmatpush2.msra.mxu0 0.0
  %273 = vmatprep.subr.mxu0 0.0
  %274 = vmatpush2.msra.mxu0 0.0
  %275 = vmatprep.subr.mxu0 0.0
  %276 = vmatpush2.msra.mxu0 0.0
  %277 = vmatprep.subr.mxu0 0.0
  %278 = vmatpush2.msra.mxu0 0.0
  %279 = vmatprep.subr.mxu0 0.0
  %280 = vmatpush2.msra.mxu0 0.0
  %281 = vmatprep.mubr.f32.mxu0 0.0
  %282 = vmatmul.mubr.f32.gmra.mxu0 %v215
  %v283 = vpop.f32.mrf.mxu0
  %v284 = vadd.f32 0.0, %v283
  %v285 = vpop.f32.mrf.mxu0
  %286 = vdwg.mxu0
  %v288 = vrot.slane %v284, 7
  %v291 = vadd.f32 %v113, %v288
  %v292 = vadd.f32 %v118, %v284
  %v293 = vtanh.pop %v291
  %v294 = vtanh.pop %v292
  %vm295 = vcmask 254977
  %296 = vst.msk [vmem:[#allocation2] sm:$0x2] %vm295, %v293
  %297 = vst.msk [vmem:[#allocation2 + $0x8] sm:$0x2] %vm295, %v294
  %v300 = vrot.slane %v293, 1
  %v301 = vsel %vm213, %v294, %v300
  %v302 = vsel %vm125, %v301, 0
  %304 = vmatprep.subr.mxu0 0.0
  %305 = vmatpush1.msra.mxu0 0.0
  %306 = vmatprep.subr.mxu0 0.0
  %307 = vmatpush1.msra.mxu0 0.0
  %308 = vmatprep.subr.mxu0 0.0
  %309 = vmatpush1.msra.mxu0 0.0
  %310 = vmatprep.subr.mxu0 0.0
  %311 = vmatpush1.msra.mxu0 0.0
  %312 = vmatprep.subr.mxu0 0.0
  %313 = vmatpush1.msra.mxu0 0.0
  %314 = vmatprep.subr.mxu0 0.0
  %315 = vmatpush1.msra.mxu0 0.0
  %316 = vmatprep.subr.mxu0 0.0
  %317 = vmatpush1.msra.mxu0 0.0
  %318 = vmatprep.subr.mxu0 0.0
  %319 = vmatpush1.msra.mxu0 0.0
  %320 = vmatprep.subr.mxu0 0.0
  %321 = vmatpush1.msra.mxu0 0.0
  %322 = vmatprep.subr.mxu0 0.0
  %323 = vmatpush1.msra.mxu0 0.0
  %324 = vmatprep.subr.mxu0 0.0
  %325 = vmatpush1.msra.mxu0 0.0
  %326 = vmatprep.subr.mxu0 0.0
  %327 = vmatpush1.msra.mxu0 0.0
  %328 = vmatprep.subr.mxu0 0.0
  %329 = vmatpush1.msra.mxu0 %v124
  %330 = vmatprep.subr.mxu0 0.0
  %331 = vmatpush1.msra.mxu0 %v123
  %332 = vmatprep.subr.mxu0 0.0
  %333 = vmatpush1.msra.mxu0 %v122
  %334 = vmatprep.subr.mxu0 0.0
  %335 = vmatpush1.msra.mxu0 %v121
  %336 = vmatprep.subr.mxu0 0.0
  %337 = vmatpush2.msra.mxu0 0.0
  %338 = vmatprep.subr.mxu0 0.0
  %339 = vmatpush2.msra.mxu0 0.0
  %340 = vmatprep.subr.mxu0 0.0
  %341 = vmatpush2.msra.mxu0 0.0
  %342 = vmatprep.subr.mxu0 0.0
  %343 = vmatpush2.msra.mxu0 0.0
  %344 = vmatprep.subr.mxu0 0.0
  %345 = vmatpush2.msra.mxu0 0.0
  %346 = vmatprep.subr.mxu0 0.0
  %347 = vmatpush2.msra.mxu0 0.0
  %348 = vmatprep.subr.mxu0 0.0
  %349 = vmatpush2.msra.mxu0 0.0
  %350 = vmatprep.subr.mxu0 0.0
  %351 = vmatpush2.msra.mxu0 0.0
  %352 = vmatprep.subr.mxu0 0.0
  %353 = vmatpush2.msra.mxu0 0.0
  %354 = vmatprep.subr.mxu0 0.0
  %355 = vmatpush2.msra.mxu0 0.0
  %356 = vmatprep.subr.mxu0 0.0
  %357 = vmatpush2.msra.mxu0 0.0
  %358 = vmatprep.subr.mxu0 0.0
  %359 = vmatpush2.msra.mxu0 0.0
  %360 = vmatprep.subr.mxu0 0.0
  %361 = vmatpush2.msra.mxu0 0.0
  %362 = vmatprep.subr.mxu0 0.0
  %363 = vmatpush2.msra.mxu0 0.0
  %364 = vmatprep.subr.mxu0 0.0
  %365 = vmatpush2.msra.mxu0 0.0
  %366 = vmatprep.subr.mxu0 0.0
  %367 = vmatpush2.msra.mxu0 0.0
  %368 = vmatprep.mubr.f32.mxu0 0.0
  %369 = vmatmul.mubr.f32.gmra.mxu0 %v302
  %v370 = vpop.f32.mrf.mxu0
  %v371 = vadd.f32 0.0, %v370
  %v372 = vpop.f32.mrf.mxu0
  %373 = vdwg.mxu0
  %v375 = vrot.slane %v371, 6
  %v376 = vrot.slane %v371, 7
  %v379 = vadd.f32 %v113, %v375
  %v380 = vadd.f32 %v118, %v376
  %v381 = vtanh.pop %v379
  %v382 = vtanh.pop %v380
  %vm383 = vcmask 256002
  %384 = vst.msk [vmem:[#allocation2] sm:$0x4] %vm383, %v381
  %385 = vst.msk [vmem:[#allocation2 + $0x8] sm:$0x4] %vm383, %v382
  %v388 = vrot.slane %v381, 2
  %v389 = vrot.slane %v382, 1
  %v390 = vsel %vm213, %v389, %v388
  %v391 = vsel %vm125, %v390, 0
  %393 = vmatprep.subr.mxu0 0.0
  %394 = vmatpush1.msra.mxu0 0.0
  %395 = vmatprep.subr.mxu0 0.0
  %396 = vmatpush1.msra.mxu0 0.0
  %397 = vmatprep.subr.mxu0 0.0
  %398 = vmatpush1.msra.mxu0 0.0
  %399 = vmatprep.subr.mxu0 0.0
  %400 = vmatpush1.msra.mxu0 0.0
  %401 = vmatprep.subr.mxu0 0.0
  %402 = vmatpush1.msra.mxu0 0.0
  %403 = vmatprep.subr.mxu0 0.0
  %404 = vmatpush1.msra.mxu0 0.0
  %405 = vmatprep.subr.mxu0 0.0
  %406 = vmatpush1.msra.mxu0 0.0
  %407 = vmatprep.subr.mxu0 0.0
  %408 = vmatpush1.msra.mxu0 0.0
  %409 = vmatprep.subr.mxu0 0.0
  %410 = vmatpush1.msra.mxu0 0.0
  %411 = vmatprep.subr.mxu0 0.0
  %412 = vmatpush1.msra.mxu0 0.0
  %413 = vmatprep.subr.mxu0 0.0
  %414 = vmatpush1.msra.mxu0 0.0
  %415 = vmatprep.subr.mxu0 0.0
  %416 = vmatpush1.msra.mxu0 0.0
  %417 = vmatprep.subr.mxu0 0.0
  %418 = vmatpush1.msra.mxu0 %v124
  %419 = vmatprep.subr.mxu0 0.0
  %420 = vmatpush1.msra.mxu0 %v123
  %421 = vmatprep.subr.mxu0 0.0
  %422 = vmatpush1.msra.mxu0 %v122
  %423 = vmatprep.subr.mxu0 0.0
  %424 = vmatpush1.msra.mxu0 %v121
  %425 = vmatprep.subr.mxu0 0.0
  %426 = vmatpush2.msra.mxu0 0.0
  %427 = vmatprep.subr.mxu0 0.0
  %428 = vmatpush2.msra.mxu0 0.0
  %429 = vmatprep.subr.mxu0 0.0
  %430 = vmatpush2.msra.mxu0 0.0
  %431 = vmatprep.subr.mxu0 0.0
  %432 = vmatpush2.msra.mxu0 0.0
  %433 = vmatprep.subr.mxu0 0.0
  %434 = vmatpush2.msra.mxu0 0.0
  %435 = vmatprep.subr.mxu0 0.0
  %436 = vmatpush2.msra.mxu0 0.0
  %437 = vmatprep.subr.mxu0 0.0
  %438 = vmatpush2.msra.mxu0 0.0
  %439 = vmatprep.subr.mxu0 0.0
  %440 = vmatpush2.msra.mxu0 0.0
  %441 = vmatprep.subr.mxu0 0.0
  %442 = vmatpush2.msra.mxu0 0.0
  %443 = vmatprep.subr.mxu0 0.0
  %444 = vmatpush2.msra.mxu0 0.0
  %445 = vmatprep.subr.mxu0 0.0
  %446 = vmatpush2.msra.mxu0 0.0
  %447 = vmatprep.subr.mxu0 0.0
  %448 = vmatpush2.msra.mxu0 0.0
  %449 = vmatprep.subr.mxu0 0.0
  %450 = vmatpush2.msra.mxu0 0.0
  %451 = vmatprep.subr.mxu0 0.0
  %452 = vmatpush2.msra.mxu0 0.0
  %453 = vmatprep.subr.mxu0 0.0
  %454 = vmatpush2.msra.mxu0 0.0
  %455 = vmatprep.subr.mxu0 0.0
  %456 = vmatpush2.msra.mxu0 0.0
  %457 = vmatprep.mubr.f32.mxu0 0.0
  %458 = vmatmul.mubr.f32.gmra.mxu0 %v391
  %v459 = vpop.f32.mrf.mxu0
  %v460 = vadd.f32 0.0, %v459
  %v461 = vpop.f32.mrf.mxu0
  %462 = vdwg.mxu0
  %v464 = vrot.slane %v460, 5
  %v465 = vrot.slane %v460, 6
  %v468 = vadd.f32 %v113, %v464
  %v469 = vadd.f32 %v118, %v465
  %v470 = vtanh.pop %v468
  %v471 = vtanh.pop %v469
  %vm472 = vcmask 257027
  %473 = vst.msk [vmem:[#allocation2] sm:$0x8] %vm472, %v470
  %474 = vst.msk [vmem:[#allocation2 + $0x8] sm:$0x8] %vm472, %v471
  %v477 = vrot.slane %v470, 3
  %v478 = vrot.slane %v471, 2
  %v479 = vsel %vm213, %v478, %v477
  %v480 = vsel %vm125, %v479, 0
  %482 = vmatprep.subr.mxu0 0.0
  %483 = vmatpush1.msra.mxu0 0.0
  %484 = vmatprep.subr.mxu0 0.0
  %485 = vmatpush1.msra.mxu0 0.0
  %486 = vmatprep.subr.mxu0 0.0
  %487 = vmatpush1.msra.mxu0 0.0
  %488 = vmatprep.subr.mxu0 0.0
  %489 = vmatpush1.msra.mxu0 0.0
  %490 = vmatprep.subr.mxu0 0.0
  %491 = vmatpush1.msra.mxu0 0.0
  %492 = vmatprep.subr.mxu0 0.0
  %493 = vmatpush1.msra.mxu0 0.0
  %494 = vmatprep.subr.mxu0 0.0
  %495 = vmatpush1.msra.mxu0 0.0
  %496 = vmatprep.subr.mxu0 0.0
  %497 = vmatpush1.msra.mxu0 0.0
  %498 = vmatprep.subr.mxu0 0.0
  %499 = vmatpush1.msra.mxu0 0.0
  %500 = vmatprep.subr.mxu0 0.0
  %501 = vmatpush1.msra.mxu0 0.0
  %502 = vmatprep.subr.mxu0 0.0
  %503 = vmatpush1.msra.mxu0 0.0
  %504 = vmatprep.subr.mxu0 0.0
  %505 = vmatpush1.msra.mxu0 0.0
  %506 = vmatprep.subr.mxu0 0.0
  %507 = vmatpush1.msra.mxu0 %v124
  %508 = vmatprep.subr.mxu0 0.0
  %509 = vmatpush1.msra.mxu0 %v123
  %510 = vmatprep.subr.mxu0 0.0
  %511 = vmatpush1.msra.mxu0 %v122
  %512 = vmatprep.subr.mxu0 0.0
  %513 = vmatpush1.msra.mxu0 %v121
  %514 = vmatprep.subr.mxu0 0.0
  %515 = vmatpush2.msra.mxu0 0.0
  %516 = vmatprep.subr.mxu0 0.0
  %517 = vmatpush2.msra.mxu0 0.0
  %518 = vmatprep.subr.mxu0 0.0
  %519 = vmatpush2.msra.mxu0 0.0
  %520 = vmatprep.subr.mxu0 0.0
  %521 = vmatpush2.msra.mxu0 0.0
  %522 = vmatprep.subr.mxu0 0.0
  %523 = vmatpush2.msra.mxu0 0.0
  %524 = vmatprep.subr.mxu0 0.0
  %525 = vmatpush2.msra.mxu0 0.0
  %526 = vmatprep.subr.mxu0 0.0
  %527 = vmatpush2.msra.mxu0 0.0
  %528 = vmatprep.subr.mxu0 0.0
  %529 = vmatpush2.msra.mxu0 0.0
  %530 = vmatprep.subr.mxu0 0.0
  %531 = vmatpush2.msra.mxu0 0.0
  %532 = vmatprep.subr.mxu0 0.0
  %533 = vmatpush2.msra.mxu0 0.0
  %534 = vmatprep.subr.mxu0 0.0
  %535 = vmatpush2.msra.mxu0 0.0
  %536 = vmatprep.subr.mxu0 0.0
  %537 = vmatpush2.msra.mxu0 0.0
  %538 = vmatprep.subr.mxu0 0.0
  %539 = vmatpush2.msra.mxu0 0.0
  %540 = vmatprep.subr.mxu0 0.0
  %541 = vmatpush2.msra.mxu0 0.0
  %542 = vmatprep.subr.mxu0 0.0
  %543 = vmatpush2.msra.mxu0 0.0
  %544 = vmatprep.subr.mxu0 0.0
  %545 = vmatpush2.msra.mxu0 0.0
  %546 = vmatprep.mubr.f32.mxu0 0.0
  %547 = vmatmul.mubr.f32.gmra.mxu0 %v480
  %v548 = vpop.f32.mrf.mxu0
  %v549 = vadd.f32 0.0, %v548
  %v550 = vpop.f32.mrf.mxu0
  %551 = vdwg.mxu0
  %v553 = vrot.slane %v549, 4
  %v554 = vrot.slane %v549, 5
  %v557 = vadd.f32 %v113, %v553
  %v558 = vadd.f32 %v118, %v554
  %v559 = vtanh.pop %v557
  %v560 = vtanh.pop %v558
  %vm561 = vcmask 258052
  %562 = vst.msk [vmem:[#allocation2] sm:$0x10] %vm561, %v559
  %563 = vst.msk [vmem:[#allocation2 + $0x8] sm:$0x10] %vm561, %v560
  %v566 = vrot.slane %v559, 4
  %v567 = vrot.slane %v560, 3
  %v568 = vsel %vm213, %v567, %v566
  %v569 = vsel %vm125, %v568, 0
  %571 = vmatprep.subr.mxu0 0.0
  %572 = vmatpush1.msra.mxu0 0.0
  %573 = vmatprep.subr.mxu0 0.0
  %574 = vmatpush1.msra.mxu0 0.0
  %575 = vmatprep.subr.mxu0 0.0
  %576 = vmatpush1.msra.mxu0 0.0
  %577 = vmatprep.subr.mxu0 0.0
  %578 = vmatpush1.msra.mxu0 0.0
  %579 = vmatprep.subr.mxu0 0.0
  %580 = vmatpush1.msra.mxu0 0.0
  %581 = vmatprep.subr.mxu0 0.0
  %582 = vmatpush1.msra.mxu0 0.0
  %583 = vmatprep.subr.mxu0 0.0
  %584 = vmatpush1.msra.mxu0 0.0
  %585 = vmatprep.subr.mxu0 0.0
  %586 = vmatpush1.msra.mxu0 0.0
  %587 = vmatprep.subr.mxu0 0.0
  %588 = vmatpush1.msra.mxu0 0.0
  %589 = vmatprep.subr.mxu0 0.0
  %590 = vmatpush1.msra.mxu0 0.0
  %591 = vmatprep.subr.mxu0 0.0
  %592 = vmatpush1.msra.mxu0 0.0
  %593 = vmatprep.subr.mxu0 0.0
  %594 = vmatpush1.msra.mxu0 0.0
  %595 = vmatprep.subr.mxu0 0.0
  %596 = vmatpush1.msra.mxu0 %v124
  %597 = vmatprep.subr.mxu0 0.0
  %598 = vmatpush1.msra.mxu0 %v123
  %599 = vmatprep.subr.mxu0 0.0
  %600 = vmatpush1.msra.mxu0 %v122
  %601 = vmatprep.subr.mxu0 0.0
  %602 = vmatpush1.msra.mxu0 %v121
  %603 = vmatprep.subr.mxu0 0.0
  %604 = vmatpush2.msra.mxu0 0.0
  %605 = vmatprep.subr.mxu0 0.0
  %606 = vmatpush2.msra.mxu0 0.0
  %607 = vmatprep.subr.mxu0 0.0
  %608 = vmatpush2.msra.mxu0 0.0
  %609 = vmatprep.subr.mxu0 0.0
  %610 = vmatpush2.msra.mxu0 0.0
  %611 = vmatprep.subr.mxu0 0.0
  %612 = vmatpush2.msra.mxu0 0.0
  %613 = vmatprep.subr.mxu0 0.0
  %614 = vmatpush2.msra.mxu0 0.0
  %615 = vmatprep.subr.mxu0 0.0
  %616 = vmatpush2.msra.mxu0 0.0
  %617 = vmatprep.subr.mxu0 0.0
  %618 = vmatpush2.msra.mxu0 0.0
  %619 = vmatprep.subr.mxu0 0.0
  %620 = vmatpush2.msra.mxu0 0.0
  %621 = vmatprep.subr.mxu0 0.0
  %622 = vmatpush2.msra.mxu0 0.0
  %623 = vmatprep.subr.mxu0 0.0
  %624 = vmatpush2.msra.mxu0 0.0
  %625 = vmatprep.subr.mxu0 0.0
  %626 = vmatpush2.msra.mxu0 0.0
  %627 = vmatprep.subr.mxu0 0.0
  %628 = vmatpush2.msra.mxu0 0.0
  %629 = vmatprep.subr.mxu0 0.0
  %630 = vmatpush2.msra.mxu0 0.0
  %631 = vmatprep.subr.mxu0 0.0
  %632 = vmatpush2.msra.mxu0 0.0
  %633 = vmatprep.subr.mxu0 0.0
  %634 = vmatpush2.msra.mxu0 0.0
  %635 = vmatprep.mubr.f32.mxu0 0.0
  %636 = vmatmul.mubr.f32.gmra.mxu0 %v569
  %v637 = vpop.f32.mrf.mxu0
  %v638 = vadd.f32 0.0, %v637
  %v639 = vpop.f32.mrf.mxu0
  %640 = vdwg.mxu0
  %v642 = vrot.slane %v638, 3
  %v643 = vrot.slane %v638, 4
  %v646 = vadd.f32 %v113, %v642
  %v647 = vadd.f32 %v118, %v643
  %v648 = vtanh.pop %v646
  %v649 = vtanh.pop %v647
  %vm650 = vcmask 259077
  %651 = vst.msk [vmem:[#allocation2] sm:$0x20] %vm650, %v648
  %652 = vst.msk [vmem:[#allocation2 + $0x8] sm:$0x20] %vm650, %v649
  %v655 = vrot.slane %v648, 5
  %v656 = vrot.slane %v649, 4
  %v657 = vsel %vm213, %v656, %v655
  %v658 = vsel %vm125, %v657, 0
  %660 = vmatprep.subr.mxu0 0.0
  %661 = vmatpush1.msra.mxu0 0.0
  %662 = vmatprep.subr.mxu0 0.0
  %663 = vmatpush1.msra.mxu0 0.0
  %664 = vmatprep.subr.mxu0 0.0
  %665 = vmatpush1.msra.mxu0 0.0
  %666 = vmatprep.subr.mxu0 0.0
  %667 = vmatpush1.msra.mxu0 0.0
  %668 = vmatprep.subr.mxu0 0.0
  %669 = vmatpush1.msra.mxu0 0.0
  %670 = vmatprep.subr.mxu0 0.0
  %671 = vmatpush1.msra.mxu0 0.0
  %672 = vmatprep.subr.mxu0 0.0
  %673 = vmatpush1.msra.mxu0 0.0
  %674 = vmatprep.subr.mxu0 0.0
  %675 = vmatpush1.msra.mxu0 0.0
  %676 = vmatprep.subr.mxu0 0.0
  %677 = vmatpush1.msra.mxu0 0.0
  %678 = vmatprep.subr.mxu0 0.0
  %679 = vmatpush1.msra.mxu0 0.0
  %680 = vmatprep.subr.mxu0 0.0
  %681 = vmatpush1.msra.mxu0 0.0
  %682 = vmatprep.subr.mxu0 0.0
  %683 = vmatpush1.msra.mxu0 0.0
  %684 = vmatprep.subr.mxu0 0.0
  %685 = vmatpush1.msra.mxu0 %v124
  %686 = vmatprep.subr.mxu0 0.0
  %687 = vmatpush1.msra.mxu0 %v123
  %688 = vmatprep.subr.mxu0 0.0
  %689 = vmatpush1.msra.mxu0 %v122
  %690 = vmatprep.subr.mxu0 0.0
  %691 = vmatpush1.msra.mxu0 %v121
  %692 = vmatprep.subr.mxu0 0.0
  %693 = vmatpush2.msra.mxu0 0.0
  %694 = vmatprep.subr.mxu0 0.0
  %695 = vmatpush2.msra.mxu0 0.0
  %696 = vmatprep.subr.mxu0 0.0
  %697 = vmatpush2.msra.mxu0 0.0
  %698 = vmatprep.subr.mxu0 0.0
  %699 = vmatpush2.msra.mxu0 0.0
  %700 = vmatprep.subr.mxu0 0.0
  %701 = vmatpush2.msra.mxu0 0.0
  %702 = vmatprep.subr.mxu0 0.0
  %703 = vmatpush2.msra.mxu0 0.0
  %704 = vmatprep.subr.mxu0 0.0
  %705 = vmatpush2.msra.mxu0 0.0
  %706 = vmatprep.subr.mxu0 0.0
  %707 = vmatpush2.msra.mxu0 0.0
  %708 = vmatprep.subr.mxu0 0.0
  %709 = vmatpush2.msra.mxu0 0.0
  %710 = vmatprep.subr.mxu0 0.0
  %711 = vmatpush2.msra.mxu0 0.0
  %712 = vmatprep.subr.mxu0 0.0
  %713 = vmatpush2.msra.mxu0 0.0
  %714 = vmatprep.subr.mxu0 0.0
  %715 = vmatpush2.msra.mxu0 0.0
  %716 = vmatprep.subr.mxu0 0.0
  %717 = vmatpush2.msra.mxu0 0.0
  %718 = vmatprep.subr.mxu0 0.0
  %719 = vmatpush2.msra.mxu0 0.0
  %720 = vmatprep.subr.mxu0 0.0
  %721 = vmatpush2.msra.mxu0 0.0
  %722 = vmatprep.subr.mxu0 0.0
  %723 = vmatpush2.msra.mxu0 0.0
  %724 = vmatprep.mubr.f32.mxu0 0.0
  %725 = vmatmul.mubr.f32.gmra.mxu0 %v658
  %v726 = vpop.f32.mrf.mxu0
  %v727 = vadd.f32 0.0, %v726
  %v728 = vpop.f32.mrf.mxu0
  %729 = vdwg.mxu0
  %v731 = vrot.slane %v727, 2
  %v732 = vrot.slane %v727, 3
  %v735 = vadd.f32 %v113, %v731
  %v736 = vadd.f32 %v118, %v732
  %v737 = vtanh.pop %v735
  %v738 = vtanh.pop %v736
  %vm739 = vcmask 260102
  %740 = vst.msk [vmem:[#allocation2] sm:$0x40] %vm739, %v737
  %741 = vst.msk [vmem:[#allocation2 + $0x8] sm:$0x40] %vm739, %v738
  %v744 = vrot.slane %v737, 6
  %v745 = vrot.slane %v738, 5
  %v746 = vsel %vm213, %v745, %v744
  %v747 = vsel %vm125, %v746, 0
  %749 = vmatprep.subr.mxu0 0.0
  %750 = vmatpush1.msra.mxu0 0.0
  %751 = vmatprep.subr.mxu0 0.0
  %752 = vmatpush1.msra.mxu0 0.0
  %753 = vmatprep.subr.mxu0 0.0
  %754 = vmatpush1.msra.mxu0 0.0
  %755 = vmatprep.subr.mxu0 0.0
  %756 = vmatpush1.msra.mxu0 0.0
  %757 = vmatprep.subr.mxu0 0.0
  %758 = vmatpush1.msra.mxu0 0.0
  %759 = vmatprep.subr.mxu0 0.0
  %760 = vmatpush1.msra.mxu0 0.0
  %761 = vmatprep.subr.mxu0 0.0
  %762 = vmatpush1.msra.mxu0 0.0
  %763 = vmatprep.subr.mxu0 0.0
  %764 = vmatpush1.msra.mxu0 0.0
  %765 = vmatprep.subr.mxu0 0.0
  %766 = vmatpush1.msra.mxu0 0.0
  %767 = vmatprep.subr.mxu0 0.0
  %768 = vmatpush1.msra.mxu0 0.0
  %769 = vmatprep.subr.mxu0 0.0
  %770 = vmatpush1.msra.mxu0 0.0
  %771 = vmatprep.subr.mxu0 0.0
  %772 = vmatpush1.msra.mxu0 0.0
  %773 = vmatprep.subr.mxu0 0.0
  %774 = vmatpush1.msra.mxu0 %v124
  %775 = vmatprep.subr.mxu0 0.0
  %776 = vmatpush1.msra.mxu0 %v123
  %777 = vmatprep.subr.mxu0 0.0
  %778 = vmatpush1.msra.mxu0 %v122
  %779 = vmatprep.subr.mxu0 0.0
  %780 = vmatpush1.msra.mxu0 %v121
  %781 = vmatprep.subr.mxu0 0.0
  %782 = vmatpush2.msra.mxu0 0.0
  %783 = vmatprep.subr.mxu0 0.0
  %784 = vmatpush2.msra.mxu0 0.0
  %785 = vmatprep.subr.mxu0 0.0
  %786 = vmatpush2.msra.mxu0 0.0
  %787 = vmatprep.subr.mxu0 0.0
  %788 = vmatpush2.msra.mxu0 0.0
  %789 = vmatprep.subr.mxu0 0.0
  %790 = vmatpush2.msra.mxu0 0.0
  %791 = vmatprep.subr.mxu0 0.0
  %792 = vmatpush2.msra.mxu0 0.0
  %793 = vmatprep.subr.mxu0 0.0
  %794 = vmatpush2.msra.mxu0 0.0
  %795 = vmatprep.subr.mxu0 0.0
  %796 = vmatpush2.msra.mxu0 0.0
  %797 = vmatprep.subr.mxu0 0.0
  %798 = vmatpush2.msra.mxu0 0.0
  %799 = vmatprep.subr.mxu0 0.0
  %800 = vmatpush2.msra.mxu0 0.0
  %801 = vmatprep.subr.mxu0 0.0
  %802 = vmatpush2.msra.mxu0 0.0
  %803 = vmatprep.subr.mxu0 0.0
  %804 = vmatpush2.msra.mxu0 0.0
  %805 = vmatprep.subr.mxu0 0.0
  %806 = vmatpush2.msra.mxu0 0.0
  %807 = vmatprep.subr.mxu0 0.0
  %808 = vmatpush2.msra.mxu0 0.0
  %809 = vmatprep.subr.mxu0 0.0
  %810 = vmatpush2.msra.mxu0 0.0
  %811 = vmatprep.subr.mxu0 0.0
  %812 = vmatpush2.msra.mxu0 0.0
  %813 = vmatprep.mubr.f32.mxu0 0.0
  %814 = vmatmul.mubr.f32.gmra.mxu0 %v747
  %v815 = vpop.f32.mrf.mxu0
  %v816 = vadd.f32 0.0, %v815
  %v817 = vpop.f32.mrf.mxu0
  %818 = vdwg.mxu0
  %v820 = vrot.slane %v816, 1
  %v821 = vrot.slane %v816, 2
  %v824 = vadd.f32 %v113, %v820
  %v825 = vadd.f32 %v118, %v821
  %v826 = vtanh.pop %v824
  %v827 = vtanh.pop %v825
  %vm828 = vcmask 261127
  %829 = vst.msk [vmem:[#allocation2] sm:$0x80] %vm828, %v826
  %830 = vst.msk [vmem:[#allocation2 + $0x8] sm:$0x80] %vm828, %v827
  %v831 = vld [vmem:[#allocation2] sm:$0xff]
  %v832 = vld [vmem:[#allocation2 + $0x8] sm:$0xff]
  %v833 = vld [vmem:[%s4] sm:$0xff]
  %v834 = vld [vmem:[%s4 + $0x8] sm:$0xff]
  %v835 = vld [vmem:[%s4 + $0x10] sm:$0xff]
  %v836 = vld [vmem:[%s4 + $0x18] sm:$0xff]
  %v837 = vld [vmem:[#allocation3] sm:$0x1]
  %v839 = vlaneseq
  %v840 = vshrl.u32 %v839, 7
  %v841 = vsub.s32 0, %v840
  %v842 = vrot.slane %v837, %v841
  %v845 = vsel %vm125, %v831, 0
  %v848 = vsel %vm125, %v832, 0
  %850 = vmatprep.subr.mxu0 0.0
  %851 = vmatpush1.msra.mxu0 0.0
  %852 = vmatprep.subr.mxu0 0.0
  %853 = vmatpush1.msra.mxu0 0.0
  %854 = vmatprep.subr.mxu0 0.0
  %855 = vmatpush1.msra.mxu0 0.0
  %856 = vmatprep.subr.mxu0 0.0
  %857 = vmatpush1.msra.mxu0 0.0
  %858 = vmatprep.subr.mxu0 0.0
  %859 = vmatpush1.msra.mxu0 0.0
  %860 = vmatprep.subr.mxu0 0.0
  %861 = vmatpush1.msra.mxu0 0.0
  %862 = vmatprep.subr.mxu0 0.0
  %863 = vmatpush1.msra.mxu0 0.0
  %864 = vmatprep.subr.mxu0 0.0
  %865 = vmatpush1.msra.mxu0 0.0
  %866 = vmatprep.subr.mxu0 0.0
  %867 = vmatpush1.msra.mxu0 0.0
  %868 = vmatprep.subr.mxu0 0.0
  %869 = vmatpush1.msra.mxu0 0.0
  %870 = vmatprep.subr.mxu0 0.0
  %871 = vmatpush1.msra.mxu0 0.0
  %872 = vmatprep.subr.mxu0 0.0
  %873 = vmatpush1.msra.mxu0 0.0
  %874 = vmatprep.subr.mxu0 0.0
  %875 = vmatpush1.msra.mxu0 %v836
  %876 = vmatprep.subr.mxu0 0.0
  %877 = vmatpush1.msra.mxu0 %v835
  %878 = vmatprep.subr.mxu0 0.0
  %879 = vmatpush1.msra.mxu0 %v834
  %880 = vmatprep.subr.mxu0 0.0
  %881 = vmatpush1.msra.mxu0 %v833
  %882 = vmatprep.subr.mxu0 0.0
  %883 = vmatpush2.msra.mxu0 0.0
  %884 = vmatprep.subr.mxu0 0.0
  %885 = vmatpush2.msra.mxu0 0.0
  %886 = vmatprep.subr.mxu0 0.0
  %887 = vmatpush2.msra.mxu0 0.0
  %888 = vmatprep.subr.mxu0 0.0
  %889 = vmatpush2.msra.mxu0 0.0
  %890 = vmatprep.subr.mxu0 0.0
  %891 = vmatpush2.msra.mxu0 0.0
  %892 = vmatprep.subr.mxu0 0.0
  %893 = vmatpush2.msra.mxu0 0.0
  %894 = vmatprep.subr.mxu0 0.0
  %895 = vmatpush2.msra.mxu0 0.0
  %896 = vmatprep.subr.mxu0 0.0
  %897 = vmatpush2.msra.mxu0 0.0
  %898 = vmatprep.subr.mxu0 0.0
  %899 = vmatpush2.msra.mxu0 0.0
  %900 = vmatprep.subr.mxu0 0.0
  %901 = vmatpush2.msra.mxu0 0.0
  %902 = vmatprep.subr.mxu0 0.0
  %903 = vmatpush2.msra.mxu0 0.0
  %904 = vmatprep.subr.mxu0 0.0
  %905 = vmatpush2.msra.mxu0 0.0
  %906 = vmatprep.subr.mxu0 0.0
  %907 = vmatpush2.msra.mxu0 0.0
  %908 = vmatprep.subr.mxu0 0.0
  %909 = vmatpush2.msra.mxu0 0.0
  %910 = vmatprep.subr.mxu0 0.0
  %911 = vmatpush2.msra.mxu0 0.0
  %912 = vmatprep.subr.mxu0 0.0
  %913 = vmatpush2.msra.mxu0 0.0
  %914 = vmatprep.mubr.f32.mxu0 0.0
  %915 = vmatmul.mubr.f32.gmra.mxu0 %v845
  %v916 = vpop.f32.mrf.mxu0
  %v917 = vadd.f32 %v842, %v916
  %v918 = vpop.f32.mrf.mxu0
  %919 = vmatprep.mubr.f32.mxu0 0.0
  %920 = vmatmul.mubr.f32.gmra.mxu0 %v848
  %v921 = vpop.f32.mrf.mxu0
  %v922 = vadd.f32 %v842, %v921
  %v923 = vpop.f32.mrf.mxu0
  %924 = vdwg.mxu0
  %v925 = vtanh.pop %v917
  %v926 = vtanh.pop %v922
  %vm927 = vcmask 7168
  %928 = vst.msk [vmem:[%s6] sm:$0xff] %vm927, %v925
  %929 = vst.msk [vmem:[%s6 + $0x8] sm:$0xff] %vm927, %v926
  // Predicated region
  $region26: #{tpu_custom_call.1} parent=0 // pred_check
    _
  $region27: #{tpu_custom_call.1} parent=0 // pred_check_branch
    %931 = sbr.rel (0) target = $region29
  $region28: #{tpu_custom_call.1} parent=0 // pred_region
    _
  $region29: #{tpu_custom_call.1} parent=0 // pred_fallthru
    _
  // Predicated region
  $region30: #{tpu_custom_call.1} parent=0 // pred_check
    _
  $region31: #{tpu_custom_call.1} parent=0 // pred_check_branch
    %933 = sbr.rel (0) target = $region33
  $region32: #{tpu_custom_call.1} parent=0 // pred_region
    _
  $region33: #{tpu_custom_call.1} parent=0 // pred_fallthru
    _

</llo_original>
